<compile_context>
chip_gen: v7x
topology: tpu7x:2x2x1
jax: 0.10.0
libtpu: 0.0.40
codegen_flags: <defaults>
</compile_context>

<pallas_src>
import functools

import jax
import jax.numpy as jnp
from jax.experimental import pallas as pl
from jax.experimental.pallas import tpu as pltpu


def dnn_kernel(x_ref, w1_ref, b1_ref, w2_ref, b2_ref, w3_ref, b3_ref, o_ref):
    # All math in f32: mem-bound regime, MXU precision passes are free here and
    # keep fidelity to the PyTorch f32 module.
    x = x_ref[...]

    # Layer 1: [TB, D_in] @ [D_in, 50] + [1, 50] -> sigmoid
    h1 = jnp.dot(x, w1_ref[...], preferred_element_type=jnp.float32)
    h1 = jax.nn.sigmoid(h1 + b1_ref[...])

    # Layer 2: [TB, 50] @ [50, 20] + [1, 20] -> sigmoid
    h2 = jnp.dot(h1, w2_ref[...], preferred_element_type=jnp.float32)
    h2 = jax.nn.sigmoid(h2 + b2_ref[...])

    # Layer 3: [TB, 20] @ [20, D_out] + [1, D_out] -> sigmoid
    h3 = jnp.dot(h2, w3_ref[...], preferred_element_type=jnp.float32)
    o_ref[...] = jax.nn.sigmoid(h3 + b3_ref[...]).astype(o_ref.dtype)


def _auto_tile_batch(batch, input_dim):
    """Pick a batch tile so the f32 x tile is ~4 MiB, keep >=4 grid steps."""
    lanes = max(128, ((input_dim + 127) // 128) * 128)   # lane-padded D_in
    tb = (4 * 1024 * 1024) // (lanes * 4)                 # ~4 MiB x tile
    tb = max(512, min(tb, 8192))
    tb = (tb // 8) * 8                                     # sublane multiple
    if batch >= 32:
        # keep >=4 grid steps (v7x 2xTC sharding + input/output DMA overlap)
        cap = max(((batch // 4) // 8) * 8, 8)
        tb = min(tb, cap)
    return min(tb, batch)


@functools.partial(jax.jit, static_argnames=("tile_batch",))
def dnn_forward(x, params, *, tile_batch=None):
    """x: [B, input_dim] float32; params: dict of w1,b1,w2,b2,w3,b3.

    tile_batch=None auto-sizes the batch tile (~4 MiB x slab, >=4 grid steps).
    Per-step VMEM ~= 2*tb*pad128(D_in)*4 (double-buffered x) +
    2*tb*128*4 (lane-padded out tile) + ~3*tb*128*4 (h1/h2/h3 temporaries) +
    ~10 KiB weights; at tb<=8192, D_in~128 that is ~30 MiB, under the 48 MiB
    scoped limit set below and under v7x's 64 MiB physical VMEM.
    If you pass tile_batch explicitly, use a multiple of 8 (or >= B).
    """
    B, input_dim = x.shape
    out_dim = params["w3"].shape[1]

    tb = _auto_tile_batch(B, input_dim) if tile_batch is None else min(tile_batch, B)
    grid = (pl.cdiv(B, tb),)          # ragged tail is masked by Pallas

    w1, b1 = params["w1"], params["b1"]
    w2, b2 = params["w2"], params["b2"]
    w3, b3 = params["w3"], params["b3"]

    def pinned(a):
        # weights/biases: same block every grid step -> stay VMEM-resident
        return pl.BlockSpec(a.shape, lambda i: (0, 0))

    return pl.pallas_call(
        dnn_kernel,
        out_shape=jax.ShapeDtypeStruct((B, out_dim), jnp.float32),
        grid=grid,
        in_specs=[
            pl.BlockSpec((tb, input_dim), lambda i: (i, 0)),   # x: batch-tiled
            pinned(w1), pinned(b1),
            pinned(w2), pinned(b2),
            pinned(w3), pinned(b3),
        ],
        out_specs=pl.BlockSpec((tb, out_dim), lambda i: (i, 0)),
        compiler_params=pltpu.CompilerParams(
            dimension_semantics=("parallel",),   # shard batch tiles on v7x 2xTC
            vmem_limit_bytes=48 * 1024 * 1024,   # unlock large tiles on v5e/v6e/v7x
        ),
    )(x, w1, b1, w2, b2, w3, b3)


def init_params(key, input_dim, output_dim):
    """Deterministic init mimicking PyTorch Linear default U[-1/sqrt(in), 1/sqrt(in)].
    Weights stored as [in, out] (transpose of torch.nn.Linear.weight)."""
    dims = [(input_dim, 50), (50, 20), (20, output_dim)]
    params = {}
    for i, (din, dout) in enumerate(dims, start=1):
        key, kw, kb = jax.random.split(key, 3)
        bound = 1.0 / jnp.sqrt(float(din))
        params[f"w{i}"] = jax.random.uniform(
            kw, (din, dout), jnp.float32, minval=-bound, maxval=bound)
        params[f"b{i}"] = jax.random.uniform(
            kb, (1, dout), jnp.float32, minval=-bound, maxval=bound)
    return params


def reference_forward(x, params):
    """Pure-JAX f32 reference (matches the PyTorch module semantics)."""
    h = jax.nn.sigmoid(x @ params["w1"] + params["b1"])
    h = jax.nn.sigmoid(h @ params["w2"] + params["b2"])
    return jax.nn.sigmoid(h @ params["w3"] + params["b3"])


if __name__ == "__main__":
    key = jax.random.PRNGKey(0)
    batch, input_dim, output_dim = 2, 32, 4

    key, kx = jax.random.split(key)
    x = jax.random.normal(kx, (batch, input_dim), dtype=jnp.float32)
    params = init_params(key, input_dim, output_dim)

    # --- small-batch path (single whole-array block) ---
    out = jax.block_until_ready(dnn_forward(x, params))
    ref = reference_forward(x, params)
    assert out.shape == (batch, output_dim)
    assert jnp.allclose(out, ref, atol=1e-5, rtol=1e-5), "mismatch vs f32 reference"

    # --- tiled path: explicit tile, multi-step grid with a ragged last tile ---
    key, kx2 = jax.random.split(key)
    x2 = jax.random.normal(kx2, (40, input_dim), dtype=jnp.float32)
    out2 = jax.block_until_ready(dnn_forward(x2, params, tile_batch=16))
    ref2 = reference_forward(x2, params)
    assert out2.shape == (40, output_dim)
    assert jnp.allclose(out2, ref2, atol=1e-5, rtol=1e-5), "tiled-path mismatch"

    # --- auto-sized tile path: larger batch exercises the >=4-step grid cap ---
    key, kx3 = jax.random.split(key)
    x3 = jax.random.normal(kx3, (1024, input_dim), dtype=jnp.float32)
    out3 = jax.block_until_ready(dnn_forward(x3, params))
    ref3 = reference_forward(x3, params)
    assert out3.shape == (1024, output_dim)
    assert jnp.allclose(out3, ref3, atol=1e-5, rtol=1e-5), "auto-tile mismatch"

    print("KERNEL_OK")
</pallas_src>

<mosaic_0001>
module attributes {stable_mosaic.version = 11 : i64} {
  func.func @dnn_kernel(%arg0: i32, %arg1: memref<2x32xf32, #tpu.memory_space<vmem>>, %arg2: memref<32x50xf32, #tpu.memory_space<vmem>>, %arg3: memref<1x50xf32, #tpu.memory_space<vmem>>, %arg4: memref<50x20xf32, #tpu.memory_space<vmem>>, %arg5: memref<1x20xf32, #tpu.memory_space<vmem>>, %arg6: memref<20x4xf32, #tpu.memory_space<vmem>>, %arg7: memref<1x4xf32, #tpu.memory_space<vmem>>, %arg8: memref<2x4xf32, #tpu.memory_space<vmem>>) attributes {dimension_semantics = [#tpu.dimension_semantics<parallel>], iteration_bounds = array<i64: 1>, scalar_prefetch = 0 : i64, scratch_operands = 0 : i64, tpu.core_type = #tpu.core_type<tc>, window_params = [{transform_indices = @transform_0, window_bounds = array<i64: 2, 32>}, {pipeline_mode = #tpu.pipeline_mode<synchronous>, transform_indices = @transform_1, window_bounds = array<i64: 32, 50>}, {pipeline_mode = #tpu.pipeline_mode<synchronous>, transform_indices = @transform_2, window_bounds = array<i64: 1, 50>}, {pipeline_mode = #tpu.pipeline_mode<synchronous>, transform_indices = @transform_3, window_bounds = array<i64: 50, 20>}, {pipeline_mode = #tpu.pipeline_mode<synchronous>, transform_indices = @transform_4, window_bounds = array<i64: 1, 20>}, {pipeline_mode = #tpu.pipeline_mode<synchronous>, transform_indices = @transform_5, window_bounds = array<i64: 20, 4>}, {pipeline_mode = #tpu.pipeline_mode<synchronous>, transform_indices = @transform_6, window_bounds = array<i64: 1, 4>}, {transform_indices = @transform_7, window_bounds = array<i64: 2, 4>}]} {
    %c0 = arith.constant 0 : index
    %c0_0 = arith.constant 0 : index
    %0 = vector.load %arg1[%c0, %c0_0] : memref<2x32xf32, #tpu.memory_space<vmem>>, vector<2x32xf32>
    %c0_1 = arith.constant 0 : index
    %c0_2 = arith.constant 0 : index
    %1 = vector.load %arg2[%c0_1, %c0_2] : memref<32x50xf32, #tpu.memory_space<vmem>>, vector<32x50xf32>
    %cst = arith.constant dense<0.000000e+00> : vector<2x50xf32>
    %2 = tpu.matmul %0, %1, %cst {dimension_numbers = #tpu.dot_dimension_numbers<[1], [0], [0], [1], [0, 0, 1, 1], [], []>} : vector<2x32xf32>, vector<32x50xf32>, vector<2x50xf32> -> vector<2x50xf32>
    %c0_3 = arith.constant 0 : index
    %c0_4 = arith.constant 0 : index
    %3 = vector.load %arg3[%c0_3, %c0_4] : memref<1x50xf32, #tpu.memory_space<vmem>>, vector<1x50xf32>
    %4 = vector.broadcast %3 : vector<1x50xf32> to vector<2x50xf32>
    %5 = arith.addf %2, %4 : vector<2x50xf32>
    %6 = arith.negf %5 : vector<2x50xf32>
    %7 = math.exp %6 : vector<2x50xf32>
    %cst_5 = arith.constant 1.000000e+00 : f32
    %8 = vector.broadcast %cst_5 : f32 to vector<2x50xf32>
    %9 = arith.addf %8, %7 : vector<2x50xf32>
    %10 = arith.divf %8, %9 : vector<2x50xf32>
    %c0_6 = arith.constant 0 : index
    %c0_7 = arith.constant 0 : index
    %11 = vector.load %arg4[%c0_6, %c0_7] : memref<50x20xf32, #tpu.memory_space<vmem>>, vector<50x20xf32>
    %cst_8 = arith.constant dense<0.000000e+00> : vector<2x20xf32>
    %12 = tpu.matmul %10, %11, %cst_8 {dimension_numbers = #tpu.dot_dimension_numbers<[1], [0], [0], [1], [0, 0, 1, 1], [], []>} : vector<2x50xf32>, vector<50x20xf32>, vector<2x20xf32> -> vector<2x20xf32>
    %c0_9 = arith.constant 0 : index
    %c0_10 = arith.constant 0 : index
    %13 = vector.load %arg5[%c0_9, %c0_10] : memref<1x20xf32, #tpu.memory_space<vmem>>, vector<1x20xf32>
    %14 = vector.broadcast %13 : vector<1x20xf32> to vector<2x20xf32>
    %15 = arith.addf %12, %14 : vector<2x20xf32>
    %16 = arith.negf %15 : vector<2x20xf32>
    %17 = math.exp %16 : vector<2x20xf32>
    %cst_11 = arith.constant 1.000000e+00 : f32
    %18 = vector.broadcast %cst_11 : f32 to vector<2x20xf32>
    %19 = arith.addf %18, %17 : vector<2x20xf32>
    %20 = arith.divf %18, %19 : vector<2x20xf32>
    %c0_12 = arith.constant 0 : index
    %c0_13 = arith.constant 0 : index
    %21 = vector.load %arg6[%c0_12, %c0_13] : memref<20x4xf32, #tpu.memory_space<vmem>>, vector<20x4xf32>
    %cst_14 = arith.constant dense<0.000000e+00> : vector<2x4xf32>
    %22 = tpu.matmul %20, %21, %cst_14 {dimension_numbers = #tpu.dot_dimension_numbers<[1], [0], [0], [1], [0, 0, 1, 1], [], []>} : vector<2x20xf32>, vector<20x4xf32>, vector<2x4xf32> -> vector<2x4xf32>
    %c0_15 = arith.constant 0 : index
    %c0_16 = arith.constant 0 : index
    %23 = vector.load %arg7[%c0_15, %c0_16] : memref<1x4xf32, #tpu.memory_space<vmem>>, vector<1x4xf32>
    %24 = vector.broadcast %23 : vector<1x4xf32> to vector<2x4xf32>
    %25 = arith.addf %22, %24 : vector<2x4xf32>
    %26 = arith.negf %25 : vector<2x4xf32>
    %27 = math.exp %26 : vector<2x4xf32>
    %cst_17 = arith.constant 1.000000e+00 : f32
    %28 = vector.broadcast %cst_17 : f32 to vector<2x4xf32>
    %29 = arith.addf %28, %27 : vector<2x4xf32>
    %30 = arith.divf %28, %29 : vector<2x4xf32>
    %c0_18 = arith.constant 0 : index
    %c0_19 = arith.constant 0 : index
    %31 = vector.load %arg8[%c0_18, %c0_19] : memref<2x4xf32, #tpu.memory_space<vmem>>, vector<2x4xf32>
    tpu.vector_store %arg8[%c0_18, %c0_19], %30 {strides = array<i32>} : memref<2x4xf32, #tpu.memory_space<vmem>>, vector<2x4xf32>,
    return
  }
  func.func @transform_0(%arg0: i32) -> (i32, i32) {
    %c0_i32 = arith.constant 0 : i32
    %c0_i32_0 = arith.constant 0 : i32
    return %arg0, %c0_i32 : i32, i32
  }
  func.func @transform_1(%arg0: i32) -> (i32, i32) {
    %c0_i32 = arith.constant 0 : i32
    %c0_i32_0 = arith.constant 0 : i32
    %c0_i32_1 = arith.constant 0 : i32
    return %c0_i32, %c0_i32_0 : i32, i32
  }
  func.func @transform_2(%arg0: i32) -> (i32, i32) {
    %c0_i32 = arith.constant 0 : i32
    %c0_i32_0 = arith.constant 0 : i32
    %c0_i32_1 = arith.constant 0 : i32
    return %c0_i32, %c0_i32_0 : i32, i32
  }
  func.func @transform_3(%arg0: i32) -> (i32, i32) {
    %c0_i32 = arith.constant 0 : i32
    %c0_i32_0 = arith.constant 0 : i32
    %c0_i32_1 = arith.constant 0 : i32
    return %c0_i32, %c0_i32_0 : i32, i32
  }
  func.func @transform_4(%arg0: i32) -> (i32, i32) {
    %c0_i32 = arith.constant 0 : i32
    %c0_i32_0 = arith.constant 0 : i32
    %c0_i32_1 = arith.constant 0 : i32
    return %c0_i32, %c0_i32_0 : i32, i32
  }
  func.func @transform_5(%arg0: i32) -> (i32, i32) {
    %c0_i32 = arith.constant 0 : i32
    %c0_i32_0 = arith.constant 0 : i32
    %c0_i32_1 = arith.constant 0 : i32
    return %c0_i32, %c0_i32_0 : i32, i32
  }
  func.func @transform_6(%arg0: i32) -> (i32, i32) {
    %c0_i32 = arith.constant 0 : i32
    %c0_i32_0 = arith.constant 0 : i32
    %c0_i32_1 = arith.constant 0 : i32
    return %c0_i32, %c0_i32_0 : i32, i32
  }
  func.func @transform_7(%arg0: i32) -> (i32, i32) {
    %c0_i32 = arith.constant 0 : i32
    %c0_i32_0 = arith.constant 0 : i32
    return %arg0, %c0_i32 : i32, i32
  }
}

</mosaic_0001>

<llo_original>
// kernel: dnn_forward.1
$region0: #{dnn_forward.1}
  #allocation0 [shape = 'u32[]', space=smem, size = 0x4, offset = 0x4, fixed_abs, tag = 'smem constant byte address 0x4 - core index']
  #allocation1 [shape = 'u32[144,128]{1,0:T(1,128)}', space=vmem, size = 0x12000, scoped, tag = 'internal scratch']
  %s0 = inlined_call_operand.vmem [shape: f32[2,32], index: 0, kind: input, shape index: {}]
  %s1 = inlined_call_operand.vmem [shape: f32[32,50], index: 1, kind: input, shape index: {}]
  %s2 = inlined_call_operand.vmem [shape: f32[1,50], index: 2, kind: input, shape index: {}]
  %s3 = inlined_call_operand.vmem [shape: f32[50,20], index: 3, kind: input, shape index: {}]
  %s4 = inlined_call_operand.vmem [shape: f32[1,20], index: 4, kind: input, shape index: {}]
  %s5 = inlined_call_operand.vmem [shape: f32[20,4], index: 5, kind: input, shape index: {}]
  %s6 = inlined_call_operand.vmem [shape: f32[1,4], index: 6, kind: input, shape index: {}]
  %s7 = inlined_call_operand.hbm [shape: f32[2,4], index: 7, kind: output, shape index: {}]
  %s8 = sld [smem:[#allocation0]]
  $region38: #{dnn_forward.1} parent=0
    _
  %s10 = ssub.s32 1, %s8
  %s11 = scalar_select 0, %s10, %s8
  $region1: #{dnn_forward.1} parent=0
    #allocation2 [shape = 'u8[1024]{0}', space=vmem, size = 0x400, scoped, tag = 'output window, operand 0, single buffered']
    #allocation3 [shape = 's32[1]{0}', space=sflag, size = 0x4, scoped, tag = 'scoped memory for dnn_forward.1']
    %12 = vsyncpa [#allocation3], 0
    // Predicated region
    $region2: #{dnn_forward.1} parent=1 // pred_check
      _
    $region3: #{dnn_forward.1} parent=1 // pred_check_branch
      %14 = sbr.rel (0) target = $region5
    $region4: #{dnn_forward.1} parent=1 // pred_region
      _
    $region5: #{dnn_forward.1} parent=1 // pred_fallthru
      _
    // Predicated region
    $region6: #{dnn_forward.1} parent=1 // pred_check
      _
    $region7: #{dnn_forward.1} parent=1 // pred_check_branch
      %16 = sbr.rel (0) target = $region9
    $region8: #{dnn_forward.1} parent=1 // pred_region
      _
    $region9: #{dnn_forward.1} parent=1 // pred_fallthru
      _
    // Predicated region
    $region10: #{dnn_forward.1} parent=1 // pred_check
      _
    $region11: #{dnn_forward.1} parent=1 // pred_check_branch
      %18 = sbr.rel (0) target = $region13
    $region12: #{dnn_forward.1} parent=1 // pred_region
      _
    $region13: #{dnn_forward.1} parent=1 // pred_fallthru
      _
    // Predicated region
    $region14: #{dnn_forward.1} parent=1 // pred_check
      _
    $region15: #{dnn_forward.1} parent=1 // pred_check_branch
      %20 = sbr.rel (0) target = $region17
    $region16: #{dnn_forward.1} parent=1 // pred_region
      _
    $region17: #{dnn_forward.1} parent=1 // pred_fallthru
      _
    // Predicated region
    $region18: #{dnn_forward.1} parent=1 // pred_check
      _
    $region19: #{dnn_forward.1} parent=1 // pred_check_branch
      %22 = sbr.rel (0) target = $region21
    $region20: #{dnn_forward.1} parent=1 // pred_region
      _
    $region21: #{dnn_forward.1} parent=1 // pred_fallthru
      _
    // Predicated region
    $region22: #{dnn_forward.1} parent=1 // pred_check
      _
    $region23: #{dnn_forward.1} parent=1 // pred_check_branch
      %24 = sbr.rel (0) target = $region25
    $region24: #{dnn_forward.1} parent=1 // pred_region
      _
    $region25: #{dnn_forward.1} parent=1 // pred_fallthru
      _
    // Predicated region
    $region26: #{dnn_forward.1} parent=1 // pred_check
      _
    $region27: #{dnn_forward.1} parent=1 // pred_check_branch
      %26 = sbr.rel (0) target = $region29
    $region28: #{dnn_forward.1} parent=1 // pred_region
      _
    $region29: #{dnn_forward.1} parent=1 // pred_fallthru
      _
    %v27 = vld [vmem:[%s0] sm:$0x3]
    %v28 = vld [vmem:[%s1] sm:$0xff]
    %v29 = vld [vmem:[%s1 + $0x8] sm:$0xff]
    %v30 = vld [vmem:[%s1 + $0x10] sm:$0xff]
    %v31 = vld [vmem:[%s1 + $0x18] sm:$0xff]
    %v32 = vld [vmem:[%s2] sm:$0x1]
    %v34 = vlaneseq
    %v35 = vshrl.u32 %v34, 7
    %v36 = vsub.s32 0, %v35
    %v37 = vrot.slane %v32, %v36
    %vm39 = vcmask 261120
    %v41 = vsel %vm39, %v27, 0
    %43 = vmatprep.subr.mxu0 0.0
    %44 = vmatpush1.msra.mxu0 %v28
    %45 = vmatprep.subr.mxu0 0.0
    %46 = vmatpush1.msra.mxu0 %v29
    %47 = vmatprep.subr.mxu0 0.0
    %48 = vmatpush1.msra.mxu0 %v30
    %49 = vmatprep.subr.mxu0 0.0
    %50 = vmatpush1.msra.mxu0 %v31
    %51 = vmatprep.subr.mxu0 0.0
    %52 = vmatpush1.msra.mxu0 0.0
    %53 = vmatprep.subr.mxu0 0.0
    %54 = vmatpush1.msra.mxu0 0.0
    %55 = vmatprep.subr.mxu0 0.0
    %56 = vmatpush1.msra.mxu0 0.0
    %57 = vmatprep.subr.mxu0 0.0
    %58 = vmatpush1.msra.mxu0 0.0
    %59 = vmatprep.subr.mxu0 0.0
    %60 = vmatpush1.msra.mxu0 0.0
    %61 = vmatprep.subr.mxu0 0.0
    %62 = vmatpush1.msra.mxu0 0.0
    %63 = vmatprep.subr.mxu0 0.0
    %64 = vmatpush1.msra.mxu0 0.0
    %65 = vmatprep.subr.mxu0 0.0
    %66 = vmatpush1.msra.mxu0 0.0
    %67 = vmatprep.subr.mxu0 0.0
    %68 = vmatpush1.msra.mxu0 0.0
    %69 = vmatprep.subr.mxu0 0.0
    %70 = vmatpush1.msra.mxu0 0.0
    %71 = vmatprep.subr.mxu0 0.0
    %72 = vmatpush1.msra.mxu0 0.0
    %73 = vmatprep.subr.mxu0 0.0
    %74 = vmatpush1.msra.mxu0 0.0
    %75 = vmatprep.subr.mxu0 0.0
    %76 = vmatpush1.msra.mxu0 0.0
    %77 = vmatprep.subr.mxu0 0.0
    %78 = vmatpush1.msra.mxu0 0.0
    %79 = vmatprep.subr.mxu0 0.0
    %80 = vmatpush1.msra.mxu0 0.0
    %81 = vmatprep.subr.mxu0 0.0
    %82 = vmatpush1.msra.mxu0 0.0
    %83 = vmatprep.subr.mxu0 0.0
    %84 = vmatpush1.msra.mxu0 0.0
    %85 = vmatprep.subr.mxu0 0.0
    %86 = vmatpush1.msra.mxu0 0.0
    %87 = vmatprep.subr.mxu0 0.0
    %88 = vmatpush1.msra.mxu0 0.0
    %89 = vmatprep.subr.mxu0 0.0
    %90 = vmatpush1.msra.mxu0 0.0
    %91 = vmatprep.subr.mxu0 0.0
    %92 = vmatpush1.msra.mxu0 0.0
    %93 = vmatprep.subr.mxu0 0.0
    %94 = vmatpush1.msra.mxu0 0.0
    %95 = vmatprep.subr.mxu0 0.0
    %96 = vmatpush1.msra.mxu0 0.0
    %97 = vmatprep.subr.mxu0 0.0
    %98 = vmatpush1.msra.mxu0 0.0
    %99 = vmatprep.subr.mxu0 0.0
    %100 = vmatpush1.msra.mxu0 0.0
    %101 = vmatprep.subr.mxu0 0.0
    %102 = vmatpush1.msra.mxu0 0.0
    %103 = vmatprep.subr.mxu0 0.0
    %104 = vmatpush1.msra.mxu0 0.0
    %105 = vmatprep.subr.mxu0 0.0
    %106 = vmatpush1.msra.mxu0 0.0
    %107 = vmatprep.mubr.f32.mxu0 0.0
    %108 = vmatmul.mubr.f32.gmra.mrb[0].mxu0 %v41
    %v109 = vpop.f32.mrb[0].mxu0
    %v110 = vadd.f32 %v37, %v109
    %v111 = vpop.f32.mrb[0].mxu0
    %112 = vdwg.mxu0
    %v113 = vxor.u32 %v110, 2147483648
    %v114 = vmul.f32 %v113, 1.442695
    %v115 = vpow.pop %v114
    %v116 = vadd.f32 %v115, 1.0
    %v117 = vrcp.pop %v116
    %v118 = vmul.f32 1.0, %v117
    %v119 = vld [vmem:[%s3] sm:$0xff]
    %v120 = vld [vmem:[%s3 + $0x8] sm:$0xff]
    %v121 = vld [vmem:[%s3 + $0x10] sm:$0xff]
    %v122 = vld [vmem:[%s3 + $0x18] sm:$0xff]
    %v123 = vld [vmem:[%s3 + $0x20] sm:$0xff]
    %v124 = vld [vmem:[%s3 + $0x28] sm:$0xff]
    %v125 = vld [vmem:[%s3 + $0x30] sm:$0x3]
    %v126 = vld [vmem:[%s4] sm:$0x1]
    %v128 = vlaneseq
    %v129 = vshrl.u32 %v128, 7
    %v130 = vsub.s32 0, %v129
    %v131 = vrot.slane %v126, %v130
    %vm133 = vcmask 408576
    %v135 = vsel %vm133, %v118, 0
    %vm137 = vcmask 1041408
    %v139 = vsel %vm137, %v125, 0
    %141 = vmatprep.subr.mxu0 0.0
    %142 = vmatpush1.msra.mxu0 %v119
    %143 = vmatprep.subr.mxu0 0.0
    %144 = vmatpush1.msra.mxu0 %v120
    %145 = vmatprep.subr.mxu0 0.0
    %146 = vmatpush1.msra.mxu0 %v121
    %147 = vmatprep.subr.mxu0 0.0
    %148 = vmatpush1.msra.mxu0 %v122
    %149 = vmatprep.subr.mxu0 0.0
    %150 = vmatpush1.msra.mxu0 %v123
    %151 = vmatprep.subr.mxu0 0.0
    %152 = vmatpush1.msra.mxu0 %v124
    %153 = vmatprep.subr.mxu0 0.0
    %154 = vmatpush1.msra.mxu0 %v139
    %155 = vmatprep.subr.mxu0 0.0
    %156 = vmatpush1.msra.mxu0 0.0
    %157 = vmatprep.subr.mxu0 0.0
    %158 = vmatpush1.msra.mxu0 0.0
    %159 = vmatprep.subr.mxu0 0.0
    %160 = vmatpush1.msra.mxu0 0.0
    %161 = vmatprep.subr.mxu0 0.0
    %162 = vmatpush1.msra.mxu0 0.0
    %163 = vmatprep.subr.mxu0 0.0
    %164 = vmatpush1.msra.mxu0 0.0
    %165 = vmatprep.subr.mxu0 0.0
    %166 = vmatpush1.msra.mxu0 0.0
    %167 = vmatprep.subr.mxu0 0.0
    %168 = vmatpush1.msra.mxu0 0.0
    %169 = vmatprep.subr.mxu0 0.0
    %170 = vmatpush1.msra.mxu0 0.0
    %171 = vmatprep.subr.mxu0 0.0
    %172 = vmatpush1.msra.mxu0 0.0
    %173 = vmatprep.subr.mxu0 0.0
    %174 = vmatpush1.msra.mxu0 0.0
    %175 = vmatprep.subr.mxu0 0.0
    %176 = vmatpush1.msra.mxu0 0.0
    %177 = vmatprep.subr.mxu0 0.0
    %178 = vmatpush1.msra.mxu0 0.0
    %179 = vmatprep.subr.mxu0 0.0
    %180 = vmatpush1.msra.mxu0 0.0
    %181 = vmatprep.subr.mxu0 0.0
    %182 = vmatpush1.msra.mxu0 0.0
    %183 = vmatprep.subr.mxu0 0.0
    %184 = vmatpush1.msra.mxu0 0.0
    %185 = vmatprep.subr.mxu0 0.0
    %186 = vmatpush1.msra.mxu0 0.0
    %187 = vmatprep.subr.mxu0 0.0
    %188 = vmatpush1.msra.mxu0 0.0
    %189 = vmatprep.subr.mxu0 0.0
    %190 = vmatpush1.msra.mxu0 0.0
    %191 = vmatprep.subr.mxu0 0.0
    %192 = vmatpush1.msra.mxu0 0.0
    %193 = vmatprep.subr.mxu0 0.0
    %194 = vmatpush1.msra.mxu0 0.0
    %195 = vmatprep.subr.mxu0 0.0
    %196 = vmatpush1.msra.mxu0 0.0
    %197 = vmatprep.subr.mxu0 0.0
    %198 = vmatpush1.msra.mxu0 0.0
    %199 = vmatprep.subr.mxu0 0.0
    %200 = vmatpush1.msra.mxu0 0.0
    %201 = vmatprep.subr.mxu0 0.0
    %202 = vmatpush1.msra.mxu0 0.0
    %203 = vmatprep.subr.mxu0 0.0
    %204 = vmatpush1.msra.mxu0 0.0
    %205 = vmatprep.mubr.f32.mxu0 0.0
    %206 = vmatmul.mubr.f32.gmra.mrb[0].mxu0 %v135
    %v207 = vpop.f32.mrb[0].mxu0
    %v208 = vadd.f32 %v131, %v207
    %v209 = vpop.f32.mrb[0].mxu0
    %210 = vdwg.mxu0
    %v211 = vxor.u32 %v208, 2147483648
    %v212 = vmul.f32 %v211, 1.442695
    %v213 = vpow.pop %v212
    %v214 = vadd.f32 %v213, 1.0
    %v215 = vrcp.pop %v214
    %v216 = vmul.f32 1.0, %v215
    %v217 = vld [vmem:[%s5] sm:$0xff]
    %v218 = vld [vmem:[%s5 + $0x8] sm:$0xff]
    %v219 = vld [vmem:[%s5 + $0x10] sm:$0xf]
    %v220 = vld [vmem:[%s6] sm:$0x1]
    %v222 = vlaneseq
    %v223 = vshrl.u32 %v222, 7
    %v224 = vsub.s32 0, %v223
    %v225 = vrot.slane %v220, %v224
    %vm227 = vcmask 162816
    %v229 = vsel %vm227, %v216, 0
    %vm231 = vcmask 1043456
    %v233 = vsel %vm231, %v219, 0
    %235 = vmatprep.subr.mxu0 0.0
    %236 = vmatpush1.msra.mxu0 %v217
    %237 = vmatprep.subr.mxu0 0.0
    %238 = vmatpush1.msra.mxu0 %v218
    %239 = vmatprep.subr.mxu0 0.0
    %240 = vmatpush1.msra.mxu0 %v233
    %241 = vmatprep.subr.mxu0 0.0
    %242 = vmatpush1.msra.mxu0 0.0
    %243 = vmatprep.subr.mxu0 0.0
    %244 = vmatpush1.msra.mxu0 0.0
    %245 = vmatprep.subr.mxu0 0.0
    %246 = vmatpush1.msra.mxu0 0.0
    %247 = vmatprep.subr.mxu0 0.0
    %248 = vmatpush1.msra.mxu0 0.0
    %249 = vmatprep.subr.mxu0 0.0
    %250 = vmatpush1.msra.mxu0 0.0
    %251 = vmatprep.subr.mxu0 0.0
    %252 = vmatpush1.msra.mxu0 0.0
    %253 = vmatprep.subr.mxu0 0.0
    %254 = vmatpush1.msra.mxu0 0.0
    %255 = vmatprep.subr.mxu0 0.0
    %256 = vmatpush1.msra.mxu0 0.0
    %257 = vmatprep.subr.mxu0 0.0
    %258 = vmatpush1.msra.mxu0 0.0
    %259 = vmatprep.subr.mxu0 0.0
    %260 = vmatpush1.msra.mxu0 0.0
    %261 = vmatprep.subr.mxu0 0.0
    %262 = vmatpush1.msra.mxu0 0.0
    %263 = vmatprep.subr.mxu0 0.0
    %264 = vmatpush1.msra.mxu0 0.0
    %265 = vmatprep.subr.mxu0 0.0
    %266 = vmatpush1.msra.mxu0 0.0
    %267 = vmatprep.subr.mxu0 0.0
    %268 = vmatpush1.msra.mxu0 0.0
    %269 = vmatprep.subr.mxu0 0.0
    %270 = vmatpush1.msra.mxu0 0.0
    %271 = vmatprep.subr.mxu0 0.0
    %272 = vmatpush1.msra.mxu0 0.0
    %273 = vmatprep.subr.mxu0 0.0
    %274 = vmatpush1.msra.mxu0 0.0
    %275 = vmatprep.subr.mxu0 0.0
    %276 = vmatpush1.msra.mxu0 0.0
    %277 = vmatprep.subr.mxu0 0.0
    %278 = vmatpush1.msra.mxu0 0.0
    %279 = vmatprep.subr.mxu0 0.0
    %280 = vmatpush1.msra.mxu0 0.0
    %281 = vmatprep.subr.mxu0 0.0
    %282 = vmatpush1.msra.mxu0 0.0
    %283 = vmatprep.subr.mxu0 0.0
    %284 = vmatpush1.msra.mxu0 0.0
    %285 = vmatprep.subr.mxu0 0.0
    %286 = vmatpush1.msra.mxu0 0.0
    %287 = vmatprep.subr.mxu0 0.0
    %288 = vmatpush1.msra.mxu0 0.0
    %289 = vmatprep.subr.mxu0 0.0
    %290 = vmatpush1.msra.mxu0 0.0
    %291 = vmatprep.subr.mxu0 0.0
    %292 = vmatpush1.msra.mxu0 0.0
    %293 = vmatprep.subr.mxu0 0.0
    %294 = vmatpush1.msra.mxu0 0.0
    %295 = vmatprep.subr.mxu0 0.0
    %296 = vmatpush1.msra.mxu0 0.0
    %297 = vmatprep.subr.mxu0 0.0
    %298 = vmatpush1.msra.mxu0 0.0
    %299 = vmatprep.mubr.f32.mxu0 0.0
    %300 = vmatmul.mubr.f32.gmra.mrb[0].mxu0 %v229
    %v301 = vpop.f32.mrb[0].mxu0
    %v302 = vadd.f32 %v225, %v301
    %v303 = vpop.f32.mrb[0].mxu0
    %304 = vdwg.mxu0
    %v305 = vxor.u32 %v302, 2147483648
    %v306 = vmul.f32 %v305, 1.442695
    %v307 = vpow.pop %v306
    %v308 = vadd.f32 %v307, 1.0
    %v309 = vrcp.pop %v308
    %v310 = vmul.f32 1.0, %v309
    %vm311 = vcmask 25600
    %312 = vst.msk [vmem:[#allocation2] sm:$0x3] %vm311, %v310
    // Predicated region
    $region30: #{dnn_forward.1} parent=1 // pred_check
      _
    $region31: #{dnn_forward.1} parent=1 // pred_check_branch
      %314 = sbr.rel (0) target = $region33
    $region32: #{dnn_forward.1} parent=1 // pred_region
      %s316 = ssub.s32 32, 32
      %317 = vsyncadd [#allocation3], %s316
      %s319 = sshll.u32 [#allocation2], 4
      %s320 = int_to_ptr.vmem [resolvable:$true] %s319
      %322 = dma.vmem_to_hbm [thread:$0]  %s320, 32, %s7, [#allocation3]
    $region33: #{dnn_forward.1} parent=1 // pred_fallthru
      _
    // Predicated region
    $region34: #{dnn_forward.1} parent=1 // pred_check
      _
    $region35: #{dnn_forward.1} parent=1 // pred_check_branch
      %324 = sbr.rel (0) target = $region37
    $region36: #{dnn_forward.1} parent=1 // pred_region
      %325 = dma.done [#allocation3], 32
    $region37: #{dnn_forward.1} parent=1 // pred_fallthru
      _
    %326 = vsyncpa [#allocation3], 1

</llo_original>
